<compile_context>
chip_gen: v7x
topology: tpu7x:2x2x1
jax: 0.10.0
libtpu: 0.0.40
codegen_flags: <defaults>
</compile_context>

<pallas_src>
import functools
import math

import jax
import jax.numpy as jnp
from jax.experimental import pallas as pl
from jax.experimental.pallas import tpu as pltpu


def _lse_pool2d_kernel(x_ref, o_ref, *, hw, groups, controller, inv_controller,
                       log_denom_c):
    blk = x_ref.shape[0]
    width = x_ref.shape[1]                       # == groups * hw
    x = x_ref[...].astype(jnp.float32)           # (blk, width) f32 in VMEM
    ax = jnp.abs(x)

    if groups == 1:
        m = jnp.max(ax, axis=-1, keepdims=True)                       # (blk, 1)
        e = jnp.exp(controller * (x - m))
        s = jnp.sum(e, axis=-1, keepdims=True)                        # (blk, 1)
        maxes, sums = [m], [s]
    else:
        lane = jax.lax.broadcasted_iota(jnp.int32, (blk, width), 1)
        # Per-window max|x| via masked full-width reductions (0 is a valid
        # identity since |x| >= 0).  Masks are recomputed from the iota so no
        # block-sized boolean temporaries stay live across the kernel.
        maxes = [
            jnp.max(jnp.where((lane >= g * hw) & (lane < (g + 1) * hw), ax, 0.0),
                    axis=-1, keepdims=True)
            for g in range(groups)
        ]
        # Dense per-lane stabilizer so exp runs once over the packed row.
        xmax_d = jnp.broadcast_to(maxes[0], (blk, width))
        for g in range(1, groups):
            xmax_d = jnp.where(lane >= g * hw,
                               jnp.broadcast_to(maxes[g], (blk, width)), xmax_d)
        e = jnp.exp(controller * (x - xmax_d))                        # dense EUP pass
        sums = [
            jnp.sum(jnp.where((lane >= g * hw) & (lane < (g + 1) * hw), e, 0.0),
                    axis=-1, keepdims=True)
            for g in range(groups)
        ]

    # Single packed relayout of both stats to a lane-dense layout BEFORE the
    # epilogue: log/mul/add then touch blk*2G/1024 dense vregs instead of
    # blk/8 one-valid-lane vregs, and the store is full-width.
    packed = jnp.concatenate(maxes + sums, axis=-1)                   # (blk, 2G)
    packed_t = jnp.transpose(packed)                                  # (2G, blk)
    m_t = packed_t[:groups, :]
    s_t = packed_t[groups:, :]
    out = m_t + jnp.log(s_t) * inv_controller - log_denom_c           # (G, blk)
    o_ref[...] = out.astype(o_ref.dtype)


def _lane_density(width):
    return width / (pl.cdiv(width, 128) * 128)


def _choose_groups(nc, hw, max_groups=5, max_width=2048):
    """Largest lane-density gain among small divisors of nc (no padding pass)."""
    best_g, best_d = 1, _lane_density(hw)
    for g in range(2, max_groups + 1):
        if nc % g != 0 or g * hw > max_width:
            continue
        d = _lane_density(g * hw)
        if d > best_d + 1e-3:
            best_g, best_d = g, d
    return best_g


def _choose_block_rows(rows, width, block_rows, f32_block_budget=4 * 1024 * 1024):
    """Rows per grid step.

    Sized so one f32 block is ~4 MiB: big enough to amortize the ~0.35 us/step
    pipeline overhead, small enough that 2 pipelined input buffers plus the
    ~5 live f32 intermediates per block stay well under v7x's 64 MiB/TC VMEM.
    """
    if block_rows is not None:                      # explicit override (tests/tuning)
        blk = min(int(block_rows), rows)
        if blk < rows:                               # tiled -> lane-aligned out blocks
            blk = max(128, (blk // 128) * 128)
            if blk >= rows:
                blk = rows
        return blk
    padded_lanes = pl.cdiv(width, 128) * 128
    cap = max(128, (f32_block_budget // (padded_lanes * 4)) // 128 * 128)
    if rows <= min(1024, cap):                       # tiny problem: one block
        return rows
    # >=4 grid steps so DMA overlaps compute and both v7x TCs get >=2 tiles.
    blk = min(cap, pl.cdiv(pl.cdiv(rows, 4), 128) * 128)
    return max(128, blk)


def lse_pool2d(x, controller=10, kernel_size=7, stride=1, block_rows=None,
               input_buffers=2):
    """x: (N, C, H, W) with H == W == kernel_size.  Returns (N, C, 1, 1)."""
    N, C, H, W = x.shape
    assert H == kernel_size and W == kernel_size and stride == 1, (
        "LSEPool2d broadcast semantics only hold when the pooling window covers "
        "the whole spatial extent (H == W == kernel_size)")
    nc, hw = N * C, H * W
    c = float(controller)
    denom = float(C * H * W)                    # torch.prod(torch.tensor(x[0].shape))

    groups = _choose_groups(nc, hw)             # windows packed per row (lane density)
    rows = nc // groups
    width = groups * hw
    xf = x.reshape(rows, width)                 # contiguous reshape: no HBM pass

    blk = _choose_block_rows(rows, width, block_rows)
    num_blocks = pl.cdiv(rows, blk)
    itemsize = x.dtype.itemsize

    kernel = functools.partial(
        _lse_pool2d_kernel,
        hw=hw, groups=groups,
        controller=c, inv_controller=1.0 / c, log_denom_c=math.log(denom) / c,
    )

    in_spec_kwargs = {}
    if input_buffers != 2:                      # optional deeper pipelining (review P7)
        in_spec_kwargs = dict(pipeline_mode=pl.Buffered(input_buffers))
    in_spec = pl.BlockSpec((blk, width), lambda i: (i, 0), **in_spec_kwargs)

    cost = pl.CostEstimate(
        flops=5 * nc * hw,                       # abs, sub, mul, max/sum reduce
        transcendentals=nc * hw + nc,            # exp per element + log per window
        bytes_accessed=nc * hw * itemsize + nc * itemsize,
    )

    out = pl.pallas_call(
        kernel,
        out_shape=jax.ShapeDtypeStruct((groups, rows), x.dtype),
        grid=(num_blocks,),
        in_specs=[in_spec],
        out_specs=pl.BlockSpec((groups, blk), lambda i: (0, i)),
        compiler_params=pltpu.CompilerParams(
            dimension_semantics=("parallel",),          # shard tiles across v7x TCs
            vmem_limit_bytes=48 * 1024 * 1024,          # above v5e's 16 MiB default,
        ),                                              # safely under v7x's 64 MiB
        cost_estimate=cost,
    )(xf)
    # out[g, r] is the result for flattened (n*c) index r*groups + g.
    return jnp.transpose(out).reshape(N, C, 1, 1)


def _lse_pool2d_ref(x, controller=10):
    xmax = jnp.max(jnp.abs(x), axis=(-2, -1), keepdims=True)
    denom = x.shape[1] * x.shape[2] * x.shape[3]
    s = jnp.sum(jnp.exp(controller * (x - xmax)), axis=(-2, -1), keepdims=True) / denom
    return xmax + jnp.log(s) / controller


if __name__ == "__main__":
    key = jax.random.PRNGKey(0)
    k1, k2, k3, k4 = jax.random.split(key, 4)

    # (a) Dense-packed path, G=5 (nc=20 divisible by 5), single block.
    x1 = jax.random.normal(k1, (2, 10, 7, 7), dtype=jnp.float32)
    o1 = jax.block_until_ready(lse_pool2d(x1, controller=10, kernel_size=7, stride=1))
    assert o1.shape == (2, 10, 1, 1)
    assert jnp.allclose(o1, _lse_pool2d_ref(x1), atol=2e-5, rtol=2e-5)

    # (b) Dense-packed path, G=2 (nc=8), single block.
    x2 = jax.random.normal(k2, (2, 4, 7, 7), dtype=jnp.float32)
    o2 = jax.block_until_ready(lse_pool2d(x2))
    assert o2.shape == (2, 4, 1, 1)
    assert jnp.allclose(o2, _lse_pool2d_ref(x2), atol=2e-5, rtol=2e-5)

    # (c) Fallback G=1 (nc=143 has no small divisor), tiled grid with ragged tail.
    x3 = jax.random.normal(k3, (11, 13, 7, 7), dtype=jnp.float32)
    o3 = jax.block_until_ready(lse_pool2d(x3, block_rows=64))
    assert o3.shape == (11, 13, 1, 1)
    assert jnp.allclose(o3, _lse_pool2d_ref(x3), atol=2e-5, rtol=2e-5)

    # (d) Dense-packed + multi-step grid + ragged last block (G=5, rows=240, blk=128).
    x4 = jax.random.normal(k4, (4, 300, 7, 7), dtype=jnp.float32)
    o4 = jax.block_until_ready(lse_pool2d(x4, block_rows=128))
    assert o4.shape == (4, 300, 1, 1)
    assert jnp.allclose(o4, _lse_pool2d_ref(x4), atol=2e-5, rtol=2e-5)

    print("KERNEL_OK")
</pallas_src>

<mosaic_0001>
module attributes {stable_mosaic.version = 11 : i64} {
  func.func @_lse_pool2d_kernel(%arg0: i32, %arg1: memref<4x245xf32, #tpu.memory_space<vmem>>, %arg2: memref<5x4xf32, #tpu.memory_space<vmem>>) attributes {dimension_semantics = [#tpu.dimension_semantics<parallel>], iteration_bounds = array<i64: 1>, scalar_prefetch = 0 : i64, scratch_operands = 0 : i64, tpu.core_type = #tpu.core_type<tc>, window_params = [{transform_indices = @transform_0, window_bounds = array<i64: 4, 245>}, {transform_indices = @transform_1, window_bounds = array<i64: 5, 4>}]} {
    %c0 = arith.constant 0 : index
    %c0_0 = arith.constant 0 : index
    %0 = vector.load %arg1[%c0, %c0_0] : memref<4x245xf32, #tpu.memory_space<vmem>>, vector<4x245xf32>
    %1 = math.absf %0 : vector<4x245xf32>
    %2 = tpu.iota {dimensions = array<i32: 1>} : vector<4x245xi32>
    %c0_i32 = arith.constant 0 : i32
    %3 = vector.broadcast %c0_i32 : i32 to vector<4x245xi32>
    %4 = arith.cmpi sge, %2, %3 : vector<4x245xi32>
    %c49_i32 = arith.constant 49 : i32
    %5 = vector.broadcast %c49_i32 : i32 to vector<4x245xi32>
    %6 = arith.cmpi slt, %2, %5 : vector<4x245xi32>
    %7 = arith.andi %4, %6 : vector<4x245xi1>
    %cst = arith.constant 0.000000e+00 : f32
    %8 = vector.broadcast %cst : f32 to vector<4x245xf32>
    %9 = arith.select %7, %1, %8 : vector<4x245xi1>, vector<4x245xf32>
    %cst_1 = arith.constant dense<0xFF800000> : vector<4xf32>
    %10 = vector.multi_reduction <maximumf>, %9, %cst_1 [1] : vector<4x245xf32> to vector<4xf32>
    %11 = vector.shape_cast %10 : vector<4xf32> to vector<4x1xf32>
    %c49_i32_2 = arith.constant 49 : i32
    %12 = vector.broadcast %c49_i32_2 : i32 to vector<4x245xi32>
    %13 = arith.cmpi sge, %2, %12 : vector<4x245xi32>
    %c98_i32 = arith.constant 98 : i32
    %14 = vector.broadcast %c98_i32 : i32 to vector<4x245xi32>
    %15 = arith.cmpi slt, %2, %14 : vector<4x245xi32>
    %16 = arith.andi %13, %15 : vector<4x245xi1>
    %cst_3 = arith.constant 0.000000e+00 : f32
    %17 = vector.broadcast %cst_3 : f32 to vector<4x245xf32>
    %18 = arith.select %16, %1, %17 : vector<4x245xi1>, vector<4x245xf32>
    %cst_4 = arith.constant dense<0xFF800000> : vector<4xf32>
    %19 = vector.multi_reduction <maximumf>, %18, %cst_4 [1] : vector<4x245xf32> to vector<4xf32>
    %20 = vector.shape_cast %19 : vector<4xf32> to vector<4x1xf32>
    %c98_i32_5 = arith.constant 98 : i32
    %21 = vector.broadcast %c98_i32_5 : i32 to vector<4x245xi32>
    %22 = arith.cmpi sge, %2, %21 : vector<4x245xi32>
    %c147_i32 = arith.constant 147 : i32
    %23 = vector.broadcast %c147_i32 : i32 to vector<4x245xi32>
    %24 = arith.cmpi slt, %2, %23 : vector<4x245xi32>
    %25 = arith.andi %22, %24 : vector<4x245xi1>
    %cst_6 = arith.constant 0.000000e+00 : f32
    %26 = vector.broadcast %cst_6 : f32 to vector<4x245xf32>
    %27 = arith.select %25, %1, %26 : vector<4x245xi1>, vector<4x245xf32>
    %cst_7 = arith.constant dense<0xFF800000> : vector<4xf32>
    %28 = vector.multi_reduction <maximumf>, %27, %cst_7 [1] : vector<4x245xf32> to vector<4xf32>
    %29 = vector.shape_cast %28 : vector<4xf32> to vector<4x1xf32>
    %c147_i32_8 = arith.constant 147 : i32
    %30 = vector.broadcast %c147_i32_8 : i32 to vector<4x245xi32>
    %31 = arith.cmpi sge, %2, %30 : vector<4x245xi32>
    %c196_i32 = arith.constant 196 : i32
    %32 = vector.broadcast %c196_i32 : i32 to vector<4x245xi32>
    %33 = arith.cmpi slt, %2, %32 : vector<4x245xi32>
    %34 = arith.andi %31, %33 : vector<4x245xi1>
    %cst_9 = arith.constant 0.000000e+00 : f32
    %35 = vector.broadcast %cst_9 : f32 to vector<4x245xf32>
    %36 = arith.select %34, %1, %35 : vector<4x245xi1>, vector<4x245xf32>
    %cst_10 = arith.constant dense<0xFF800000> : vector<4xf32>
    %37 = vector.multi_reduction <maximumf>, %36, %cst_10 [1] : vector<4x245xf32> to vector<4xf32>
    %38 = vector.shape_cast %37 : vector<4xf32> to vector<4x1xf32>
    %c196_i32_11 = arith.constant 196 : i32
    %39 = vector.broadcast %c196_i32_11 : i32 to vector<4x245xi32>
    %40 = arith.cmpi sge, %2, %39 : vector<4x245xi32>
    %c245_i32 = arith.constant 245 : i32
    %41 = vector.broadcast %c245_i32 : i32 to vector<4x245xi32>
    %42 = arith.cmpi slt, %2, %41 : vector<4x245xi32>
    %43 = arith.andi %40, %42 : vector<4x245xi1>
    %cst_12 = arith.constant 0.000000e+00 : f32
    %44 = vector.broadcast %cst_12 : f32 to vector<4x245xf32>
    %45 = arith.select %43, %1, %44 : vector<4x245xi1>, vector<4x245xf32>
    %cst_13 = arith.constant dense<0xFF800000> : vector<4xf32>
    %46 = vector.multi_reduction <maximumf>, %45, %cst_13 [1] : vector<4x245xf32> to vector<4xf32>
    %47 = vector.shape_cast %46 : vector<4xf32> to vector<4x1xf32>
    %48 = vector.shape_cast %11 : vector<4x1xf32> to vector<4x1xf32>
    %49 = vector.broadcast %48 : vector<4x1xf32> to vector<4x245xf32>
    %c49_i32_14 = arith.constant 49 : i32
    %50 = vector.broadcast %c49_i32_14 : i32 to vector<4x245xi32>
    %51 = arith.cmpi sge, %2, %50 : vector<4x245xi32>
    %52 = vector.shape_cast %20 : vector<4x1xf32> to vector<4x1xf32>
    %53 = vector.broadcast %52 : vector<4x1xf32> to vector<4x245xf32>
    %54 = arith.select %51, %53, %49 : vector<4x245xi1>, vector<4x245xf32>
    %c98_i32_15 = arith.constant 98 : i32
    %55 = vector.broadcast %c98_i32_15 : i32 to vector<4x245xi32>
    %56 = arith.cmpi sge, %2, %55 : vector<4x245xi32>
    %57 = vector.shape_cast %29 : vector<4x1xf32> to vector<4x1xf32>
    %58 = vector.broadcast %57 : vector<4x1xf32> to vector<4x245xf32>
    %59 = arith.select %56, %58, %54 : vector<4x245xi1>, vector<4x245xf32>
    %c147_i32_16 = arith.constant 147 : i32
    %60 = vector.broadcast %c147_i32_16 : i32 to vector<4x245xi32>
    %61 = arith.cmpi sge, %2, %60 : vector<4x245xi32>
    %62 = vector.shape_cast %38 : vector<4x1xf32> to vector<4x1xf32>
    %63 = vector.broadcast %62 : vector<4x1xf32> to vector<4x245xf32>
    %64 = arith.select %61, %63, %59 : vector<4x245xi1>, vector<4x245xf32>
    %c196_i32_17 = arith.constant 196 : i32
    %65 = vector.broadcast %c196_i32_17 : i32 to vector<4x245xi32>
    %66 = arith.cmpi sge, %2, %65 : vector<4x245xi32>
    %67 = vector.shape_cast %47 : vector<4x1xf32> to vector<4x1xf32>
    %68 = vector.broadcast %67 : vector<4x1xf32> to vector<4x245xf32>
    %69 = arith.select %66, %68, %64 : vector<4x245xi1>, vector<4x245xf32>
    %70 = arith.subf %0, %69 : vector<4x245xf32>
    %cst_18 = arith.constant 1.000000e+01 : f32
    %71 = vector.broadcast %cst_18 : f32 to vector<4x245xf32>
    %72 = arith.mulf %71, %70 : vector<4x245xf32>
    %73 = math.exp %72 : vector<4x245xf32>
    %c0_i32_19 = arith.constant 0 : i32
    %74 = vector.broadcast %c0_i32_19 : i32 to vector<4x245xi32>
    %75 = arith.cmpi sge, %2, %74 : vector<4x245xi32>
    %c49_i32_20 = arith.constant 49 : i32
    %76 = vector.broadcast %c49_i32_20 : i32 to vector<4x245xi32>
    %77 = arith.cmpi slt, %2, %76 : vector<4x245xi32>
    %78 = arith.andi %75, %77 : vector<4x245xi1>
    %cst_21 = arith.constant 0.000000e+00 : f32
    %79 = vector.broadcast %cst_21 : f32 to vector<4x245xf32>
    %80 = arith.select %78, %73, %79 : vector<4x245xi1>, vector<4x245xf32>
    %cst_22 = arith.constant dense<0.000000e+00> : vector<4xf32>
    %81 = vector.multi_reduction <add>, %80, %cst_22 [1] : vector<4x245xf32> to vector<4xf32>
    %82 = vector.shape_cast %81 : vector<4xf32> to vector<4x1xf32>
    %c49_i32_23 = arith.constant 49 : i32
    %83 = vector.broadcast %c49_i32_23 : i32 to vector<4x245xi32>
    %84 = arith.cmpi sge, %2, %83 : vector<4x245xi32>
    %c98_i32_24 = arith.constant 98 : i32
    %85 = vector.broadcast %c98_i32_24 : i32 to vector<4x245xi32>
    %86 = arith.cmpi slt, %2, %85 : vector<4x245xi32>
    %87 = arith.andi %84, %86 : vector<4x245xi1>
    %cst_25 = arith.constant 0.000000e+00 : f32
    %88 = vector.broadcast %cst_25 : f32 to vector<4x245xf32>
    %89 = arith.select %87, %73, %88 : vector<4x245xi1>, vector<4x245xf32>
    %cst_26 = arith.constant dense<0.000000e+00> : vector<4xf32>
    %90 = vector.multi_reduction <add>, %89, %cst_26 [1] : vector<4x245xf32> to vector<4xf32>
    %91 = vector.shape_cast %90 : vector<4xf32> to vector<4x1xf32>
    %c98_i32_27 = arith.constant 98 : i32
    %92 = vector.broadcast %c98_i32_27 : i32 to vector<4x245xi32>
    %93 = arith.cmpi sge, %2, %92 : vector<4x245xi32>
    %c147_i32_28 = arith.constant 147 : i32
    %94 = vector.broadcast %c147_i32_28 : i32 to vector<4x245xi32>
    %95 = arith.cmpi slt, %2, %94 : vector<4x245xi32>
    %96 = arith.andi %93, %95 : vector<4x245xi1>
    %cst_29 = arith.constant 0.000000e+00 : f32
    %97 = vector.broadcast %cst_29 : f32 to vector<4x245xf32>
    %98 = arith.select %96, %73, %97 : vector<4x245xi1>, vector<4x245xf32>
    %cst_30 = arith.constant dense<0.000000e+00> : vector<4xf32>
    %99 = vector.multi_reduction <add>, %98, %cst_30 [1] : vector<4x245xf32> to vector<4xf32>
    %100 = vector.shape_cast %99 : vector<4xf32> to vector<4x1xf32>
    %c147_i32_31 = arith.constant 147 : i32
    %101 = vector.broadcast %c147_i32_31 : i32 to vector<4x245xi32>
    %102 = arith.cmpi sge, %2, %101 : vector<4x245xi32>
    %c196_i32_32 = arith.constant 196 : i32
    %103 = vector.broadcast %c196_i32_32 : i32 to vector<4x245xi32>
    %104 = arith.cmpi slt, %2, %103 : vector<4x245xi32>
    %105 = arith.andi %102, %104 : vector<4x245xi1>
    %cst_33 = arith.constant 0.000000e+00 : f32
    %106 = vector.broadcast %cst_33 : f32 to vector<4x245xf32>
    %107 = arith.select %105, %73, %106 : vector<4x245xi1>, vector<4x245xf32>
    %cst_34 = arith.constant dense<0.000000e+00> : vector<4xf32>
    %108 = vector.multi_reduction <add>, %107, %cst_34 [1] : vector<4x245xf32> to vector<4xf32>
    %109 = vector.shape_cast %108 : vector<4xf32> to vector<4x1xf32>
    %c196_i32_35 = arith.constant 196 : i32
    %110 = vector.broadcast %c196_i32_35 : i32 to vector<4x245xi32>
    %111 = arith.cmpi sge, %2, %110 : vector<4x245xi32>
    %c245_i32_36 = arith.constant 245 : i32
    %112 = vector.broadcast %c245_i32_36 : i32 to vector<4x245xi32>
    %113 = arith.cmpi slt, %2, %112 : vector<4x245xi32>
    %114 = arith.andi %111, %113 : vector<4x245xi1>
    %cst_37 = arith.constant 0.000000e+00 : f32
    %115 = vector.broadcast %cst_37 : f32 to vector<4x245xf32>
    %116 = arith.select %114, %73, %115 : vector<4x245xi1>, vector<4x245xf32>
    %cst_38 = arith.constant dense<0.000000e+00> : vector<4xf32>
    %117 = vector.multi_reduction <add>, %116, %cst_38 [1] : vector<4x245xf32> to vector<4xf32>
    %118 = vector.shape_cast %117 : vector<4xf32> to vector<4x1xf32>
    %119 = tpu.concatenate %11, %20, %29, %38, %47, %82, %91, %100, %109, %118 in 1 : vector<4x1xf32>, vector<4x1xf32>, vector<4x1xf32>, vector<4x1xf32>, vector<4x1xf32>, vector<4x1xf32>, vector<4x1xf32>, vector<4x1xf32>, vector<4x1xf32>, vector<4x1xf32> -> vector<4x10xf32>
    %120 = tpu.transpose %119, [1, 0] : vector<4x10xf32> -> vector<10x4xf32>
    %121 = vector.extract_strided_slice %120 {offsets = [0, 0], sizes = [5, 4], strides = [1, 1]} : vector<10x4xf32> to vector<5x4xf32>
    %122 = vector.extract_strided_slice %120 {offsets = [5, 0], sizes = [5, 4], strides = [1, 1]} : vector<10x4xf32> to vector<5x4xf32>
    %123 = math.log %122 : vector<5x4xf32>
    %cst_39 = arith.constant 1.000000e-01 : f32
    %124 = vector.broadcast %cst_39 : f32 to vector<5x4xf32>
    %125 = arith.mulf %123, %124 : vector<5x4xf32>
    %126 = arith.addf %121, %125 : vector<5x4xf32>
    %cst_40 = arith.constant 0.619440555 : f32
    %127 = vector.broadcast %cst_40 : f32 to vector<5x4xf32>
    %128 = arith.subf %126, %127 : vector<5x4xf32>
    %c0_41 = arith.constant 0 : index
    %c0_42 = arith.constant 0 : index
    %129 = vector.load %arg2[%c0_41, %c0_42] : memref<5x4xf32, #tpu.memory_space<vmem>>, vector<5x4xf32>
    tpu.vector_store %arg2[%c0_41, %c0_42], %128 {strides = array<i32>} : memref<5x4xf32, #tpu.memory_space<vmem>>, vector<5x4xf32>,
    return
  }
  func.func @transform_0(%arg0: i32) -> (i32, i32) {
    %c0_i32 = arith.constant 0 : i32
    %c0_i32_0 = arith.constant 0 : i32
    return %arg0, %c0_i32 : i32, i32
  }
  func.func @transform_1(%arg0: i32) -> (i32, i32) {
    %c0_i32 = arith.constant 0 : i32
    %c0_i32_0 = arith.constant 0 : i32
    return %c0_i32, %arg0 : i32, i32
  }
}

</mosaic_0001>

<llo_original>
// kernel: tpu_custom_call.1
$region0: #{tpu_custom_call.1}
  #allocation0 [shape = 'u32[]', space=smem, size = 0x4, offset = 0x4, fixed_abs, tag = 'smem constant byte address 0x4 - core index']
  #allocation1 [shape = 'u32[144,128]{1,0:T(1,128)}', space=vmem, size = 0x12000, scoped, tag = 'internal scratch']
  %s0 = inlined_call_operand.hbm [shape: f32[4,245], index: 0, kind: input, shape index: {}]
  %s1 = inlined_call_operand.vmem [shape: f32[5,4], index: 1, kind: output, shape index: {}]
  %s2 = sld [smem:[#allocation0]]
  $region18: #{tpu_custom_call.1} parent=0
    _
  %s4 = ssub.s32 1, %s2
  %s5 = scalar_select 0, %s4, %s2
  $region1: #{tpu_custom_call.1} parent=0
    #allocation2 [shape = 'u8[4096]{0}', space=vmem, size = 0x1000, scoped, tag = 'input window, operand 0, single buffered']
    #allocation3 [shape = 's32[1]{0}', space=sflag, size = 0x4, scoped, tag = 'scoped memory for tpu_custom_call.1']
    %6 = vsyncpa [#allocation3], 0
    // Predicated region
    $region2: #{tpu_custom_call.1} parent=1 // pred_check
      _
    $region3: #{tpu_custom_call.1} parent=1 // pred_check_branch
      %8 = sbr.rel (0) target = $region5
    $region4: #{tpu_custom_call.1} parent=1 // pred_region
      %s10 = ssub.s32 128, 128
      %11 = vsyncadd [#allocation3], %s10
      %s13 = sshll.u32 [#allocation2], 4
      %s14 = int_to_ptr.vmem [resolvable:$true] %s13
      %16 = dma.hbm_to_vmem [thread:$0]  %s0, 128, %s14, [#allocation3]
    $region5: #{tpu_custom_call.1} parent=1 // pred_fallthru
      _
    // Predicated region
    $region6: #{tpu_custom_call.1} parent=1 // pred_check
      _
    $region7: #{tpu_custom_call.1} parent=1 // pred_check_branch
      %18 = sbr.rel (0) target = $region9
    $region8: #{tpu_custom_call.1} parent=1 // pred_region
      %19 = dma.done [#allocation3], 128
    $region9: #{tpu_custom_call.1} parent=1 // pred_fallthru
      _
    %v20 = vld [vmem:[#allocation2] sm:$0xff]
    %v21 = vand.u32 2147483647, %v20
    %v22 = vlaneseq
    %v23 = vand.u32 %v22, 127
    %v24 = vadd.s32 %v23, 128
    %vm25 = vcmp.ge.s32.totalorder %v23, 0
    %vm26 = vcmp.ge.s32.totalorder %v24, 0
    %vm27 = vcmp.lt.s32.totalorder %v23, 49
    %vm28 = vcmp.lt.s32.totalorder %v24, 49
    %vm29 = vmand %vm25, %vm27
    %vm30 = vmand %vm26, %vm28
    %v32 = vcombine.high %v21, %v21
    %v34 = vsel %vm29, %v21, 0.0
    %v35 = vsel %vm30, %v32, 0.0
    %vm36 = vcmask 1043456
    %v37 = vsel %vm36, %v34, -inf
    %vm38 = vcmask 953344
    %v39 = vsel %vm38, %v35, -inf
    %v40 = vmax.f32 %v37, %v39
    %41 = vmax.xlane.f32.xlu0 %v40
    %v42 = vpop.xlane.xlu0 %41
    %vm43 = vcmp.ge.s32.totalorder %v23, 49
    %vm44 = vcmp.ge.s32.totalorder %v24, 49
    %vm45 = vcmp.lt.s32.totalorder %v23, 98
    %vm46 = vcmp.lt.s32.totalorder %v24, 98
    %vm47 = vmand %vm43, %vm45
    %vm48 = vmand %vm44, %vm46
    %v49 = vsel %vm47, %v21, 0.0
    %v50 = vsel %vm48, %v32, 0.0
    %v51 = vsel %vm36, %v49, -inf
    %v52 = vsel %vm38, %v50, -inf
    %v53 = vmax.f32 %v51, %v52
    %54 = vmax.xlane.f32.xlu0 %v53
    %v55 = vpop.xlane.xlu0 %54
    %vm56 = vcmp.ge.s32.totalorder %v23, 98
    %vm57 = vcmp.ge.s32.totalorder %v24, 98
    %vm58 = vcmp.lt.s32.totalorder %v23, 147
    %vm59 = vcmp.lt.s32.totalorder %v24, 147
    %vm60 = vmand %vm56, %vm58
    %vm61 = vmand %vm57, %vm59
    %v62 = vsel %vm60, %v21, 0.0
    %v63 = vsel %vm61, %v32, 0.0
    %v64 = vsel %vm36, %v62, -inf
    %v65 = vsel %vm38, %v63, -inf
    %v66 = vmax.f32 %v64, %v65
    %67 = vmax.xlane.f32.xlu0 %v66
    %v68 = vpop.xlane.xlu0 %67
    %vm69 = vcmp.ge.s32.totalorder %v23, 147
    %vm70 = vcmp.ge.s32.totalorder %v24, 147
    %vm71 = vcmp.lt.s32.totalorder %v23, 196
    %vm72 = vcmp.lt.s32.totalorder %v24, 196
    %vm73 = vmand %vm69, %vm71
    %vm74 = vmand %vm70, %vm72
    %v75 = vsel %vm73, %v21, 0.0
    %v76 = vsel %vm74, %v32, 0.0
    %v77 = vsel %vm36, %v75, -inf
    %v78 = vsel %vm38, %v76, -inf
    %v79 = vmax.f32 %v77, %v78
    %80 = vmax.xlane.f32.xlu0 %v79
    %v81 = vpop.xlane.xlu0 %80
    %vm82 = vcmp.ge.s32.totalorder %v23, 196
    %vm83 = vcmp.ge.s32.totalorder %v24, 196
    %vm84 = vcmp.lt.s32.totalorder %v23, 245
    %vm85 = vcmp.lt.s32.totalorder %v24, 245
    %vm86 = vmand %vm82, %vm84
    %vm87 = vmand %vm83, %vm85
    %v88 = vsel %vm86, %v21, 0.0
    %v89 = vsel %vm87, %v32, 0.0
    %v90 = vsel %vm36, %v88, -inf
    %v91 = vsel %vm38, %v89, -inf
    %v92 = vmax.f32 %v90, %v91
    %93 = vmax.xlane.f32.xlu0 %v92
    %v94 = vpop.xlane.xlu0 %93
    %v95 = vsel %vm43, %v55, %v42
    %v96 = vsel %vm44, %v55, %v42
    %v97 = vsel %vm56, %v68, %v95
    %v98 = vsel %vm57, %v68, %v96
    %v99 = vsel %vm69, %v81, %v97
    %v100 = vsel %vm70, %v81, %v98
    %v101 = vsel %vm82, %v94, %v99
    %v102 = vsel %vm83, %v94, %v100
    %v105 = vcombine.low %v101, %v102
    %v107 = vsub.f32 %v20, %v105
    %v108 = vmul.f32 %v107, 10.0
    %v109 = vmul.f32 %v108, 1.442695
    %v110 = vpow.pop %v109
    %v112 = vcombine.high %v110, %v110
    %v114 = vsel %vm29, %v110, 0.0
    %v115 = vsel %vm30, %v112, 0.0
    %v116 = vsel %vm36, %v114, 0.0
    %v117 = vsel %vm38, %v115, 0.0
    %v118 = vadd.f32 %v116, %v117
    %119 = vadd.xlane.f32.xlu0 %v118
    %v120 = vpop.xlane.xlu0 %119
    %v121 = vsel %vm47, %v110, 0.0
    %v122 = vsel %vm48, %v112, 0.0
    %v123 = vsel %vm36, %v121, 0.0
    %v124 = vsel %vm38, %v122, 0.0
    %v125 = vadd.f32 %v123, %v124
    %126 = vadd.xlane.f32.xlu0 %v125
    %v127 = vpop.xlane.xlu0 %126
    %v128 = vsel %vm60, %v110, 0.0
    %v129 = vsel %vm61, %v112, 0.0
    %v130 = vsel %vm36, %v128, 0.0
    %v131 = vsel %vm38, %v129, 0.0
    %v132 = vadd.f32 %v130, %v131
    %133 = vadd.xlane.f32.xlu0 %v132
    %v134 = vpop.xlane.xlu0 %133
    %v135 = vsel %vm73, %v110, 0.0
    %v136 = vsel %vm74, %v112, 0.0
    %v137 = vsel %vm36, %v135, 0.0
    %v138 = vsel %vm38, %v136, 0.0
    %v139 = vadd.f32 %v137, %v138
    %140 = vadd.xlane.f32.xlu0 %v139
    %v141 = vpop.xlane.xlu0 %140
    %v142 = vsel %vm86, %v110, 0.0
    %v143 = vsel %vm87, %v112, 0.0
    %v144 = vsel %vm36, %v142, 0.0
    %v145 = vsel %vm38, %v143, 0.0
    %v146 = vadd.f32 %v144, %v145
    %147 = vadd.xlane.f32.xlu0 %v146
    %v148 = vpop.xlane.xlu0 %147
    %vm149 = vcmask 7168
    %v150 = vsel %vm149, %v42, %v55
    %vm151 = vcmask 15360
    %v152 = vsel %vm151, %v150, %v68
    %vm153 = vcmask 23552
    %v154 = vsel %vm153, %v152, %v81
    %vm155 = vcmask 31744
    %v156 = vsel %vm155, %v154, %v94
    %vm157 = vcmask 39936
    %v158 = vsel %vm157, %v156, %v120
    %vm159 = vcmask 48128
    %v160 = vsel %vm159, %v158, %v127
    %vm161 = vcmask 56320
    %v162 = vsel %vm161, %v160, %v134
    %vm163 = vcmask 64512
    %v164 = vsel %vm163, %v162, %v141
    %vm165 = vcmask 72704
    %v166 = vsel %vm165, %v164, %v148
    %167 = vxpose.xlu0.b32.start [1/16] %v166, 128
    %168 = vxpose.xlu0.b32.cont [2/16] 0.0, 128
    %169 = vxpose.xlu0.b32.cont [3/16] 0.0, 128
    %170 = vxpose.xlu0.b32.cont [4/16] 0.0, 128
    %171 = vxpose.xlu0.b32.cont [5/16] 0.0, 128
    %172 = vxpose.xlu0.b32.cont [6/16] 0.0, 128
    %173 = vxpose.xlu0.b32.cont [7/16] 0.0, 128
    %174 = vxpose.xlu0.b32.cont [8/16] 0.0, 128
    %175 = vxpose.xlu0.b32.cont [9/16] 0.0, 128
    %176 = vxpose.xlu0.b32.cont [10/16] 0.0, 128
    %177 = vxpose.xlu0.b32.cont [11/16] 0.0, 128
    %178 = vxpose.xlu0.b32.cont [12/16] 0.0, 128
    %179 = vxpose.xlu0.b32.cont [13/16] 0.0, 128
    %180 = vxpose.xlu0.b32.cont [14/16] 0.0, 128
    %181 = vxpose.xlu0.b32.cont [15/16] 0.0, 128
    %182 = vxpose.xlu0.b32.end [16/16] 0.0, 128
    %v183 = vpop.trf.xlu0
    %v184 = vpop.trf.xlu0
    %v185 = vpop.trf.xlu0
    %v186 = vpop.trf.xlu0
    %v187 = vpop.trf.xlu0
    %v188 = vpop.trf.xlu0
    %v189 = vpop.trf.xlu0
    %v190 = vpop.trf.xlu0
    %v191 = vpop.trf.xlu0
    %v192 = vpop.trf.xlu0
    %v193 = vpop.trf.xlu0
    %v194 = vpop.trf.xlu0
    %v195 = vpop.trf.xlu0
    %v196 = vpop.trf.xlu0
    %v197 = vpop.trf.xlu0
    %v198 = vpop.trf.xlu0
    %v199 = vlog2.pop %v183
    %v200 = vmul.f32 %v199, 0.6931472
    %v201 = vlog2.pop %v184
    %v202 = vmul.f32 %v201, 0.6931472
    %v203 = vmul.f32 %v200, 0.1
    %v204 = vmul.f32 %v202, 0.1
    %vm207 = vcmask 1042432
    %v208 = vrot.slane %v203, 5
    %v209 = vrot.slane %v204, 5
    %v210 = vsel %vm207, %v208, %v209
    %v212 = vadd.f32 %v183, %v210
    %v213 = vsub.f32 %v212, 0.61944056
    %vm214 = vcmask 28672
    %215 = vst.msk [vmem:[%s1] sm:$0x1f] %vm214, %v213
    // Predicated region
    $region10: #{tpu_custom_call.1} parent=1 // pred_check
      _
    $region11: #{tpu_custom_call.1} parent=1 // pred_check_branch
      %217 = sbr.rel (0) target = $region13
    $region12: #{tpu_custom_call.1} parent=1 // pred_region
      _
    $region13: #{tpu_custom_call.1} parent=1 // pred_fallthru
      _
    // Predicated region
    $region14: #{tpu_custom_call.1} parent=1 // pred_check
      _
    $region15: #{tpu_custom_call.1} parent=1 // pred_check_branch
      %219 = sbr.rel (0) target = $region17
    $region16: #{tpu_custom_call.1} parent=1 // pred_region
      _
    $region17: #{tpu_custom_call.1} parent=1 // pred_fallthru
      _
    %220 = vsyncpa [#allocation3], 1

</llo_original>
